<compile_context>
chip_gen: v5e
topology: v5e:2x2
jax: 0.10.0
libtpu: 0.0.40
codegen_flags: <defaults>
</compile_context>

<pallas_src>
import jax
import jax.numpy as jnp
from jax.experimental import pallas as pl
from jax.experimental.pallas import tpu as pltpu


def _mlp_kernel(x_ref, w1_ref, b1_ref, w2_ref, b2_ref, o_ref):
    # One row tile: two MXU matmuls (f32 accumulation) + bias adds + ReLU on the VPU.
    x = x_ref[...]                                              # (TB, D_in)
    h = jnp.dot(x, w1_ref[...], preferred_element_type=jnp.float32)
    h = jnp.maximum(h + b1_ref[...], 0.0)                       # bias bcast + ReLU, f32
    h = h.astype(w2_ref.dtype)                                  # bf16 path: feed MXU narrow
    y = jnp.dot(h, w2_ref[...], preferred_element_type=jnp.float32)
    o_ref[...] = (y + b2_ref[...]).astype(o_ref.dtype)


def _forward_single_tile(x, w1, b1_2d, w2, b2_2d):
    """Small batch: no grid, no pipelining — whole problem lives in VMEM."""
    B = x.shape[0]
    D_out = w2.shape[1]
    vmem_spec = pl.BlockSpec(memory_space=pltpu.MemorySpace.VMEM)
    return pl.pallas_call(
        _mlp_kernel,
        out_shape=jax.ShapeDtypeStruct((B, D_out), jnp.float32),
        in_specs=[vmem_spec] * 5,
        out_specs=vmem_spec,
    )(x, w1, b1_2d, w2, b2_2d)


def _forward_batch_tiled(x, w1, b1_2d, w2, b2_2d, tb):
    """Large batch: tile rows only; weights/biases stay resident across grid steps.

    The grid over-covers B (no wrapper-side pad): Pallas masks the boundary
    tile's out-of-range output rows, and per-row math means stale reads in that
    tile cannot affect any valid row.
    """
    B, D_in = x.shape
    H = w1.shape[1]
    D_out = w2.shape[1]
    n_tiles = pl.cdiv(B, tb)

    return pl.pallas_call(
        _mlp_kernel,
        out_shape=jax.ShapeDtypeStruct((B, D_out), jnp.float32),
        grid=(n_tiles,),
        in_specs=[
            pl.BlockSpec((tb, D_in), lambda i: (i, 0)),   # activations: stream per tile
            pl.BlockSpec((D_in, H), lambda i: (0, 0)),    # weights: same block every step
            pl.BlockSpec((1, H), lambda i: (0, 0)),
            pl.BlockSpec((H, D_out), lambda i: (0, 0)),
            pl.BlockSpec((1, D_out), lambda i: (0, 0)),
        ],
        out_specs=pl.BlockSpec((tb, D_out), lambda i: (i, 0)),
        compiler_params=pltpu.CompilerParams(
            dimension_semantics=("parallel",),            # v7x shards tiles over 2 TCs
        ),
    )(x, w1, b1_2d, w2, b2_2d)


def _round_up(n, m):
    return ((n + m - 1) // m) * m


def simple_nn_forward(x, w1, b1, w2, b2, *, batch_tile=2048, small_batch_max=512,
                      use_bf16=False):
    """x: (B, D_in); w1: (D_in, H); b1: (H,); w2: (H, D_out); b2: (D_out,).

    use_bf16=True streams x/w1/w2 as bf16 (f32 accumulation, f32 biases/output);
    default f32 keeps bit-exact parity with the PyTorch module.
    """
    b1_2d = b1.reshape(1, -1).astype(jnp.float32)
    b2_2d = b2.reshape(1, -1).astype(jnp.float32)

    if use_bf16:
        x_in = x.astype(jnp.bfloat16)
        w1_in = w1.astype(jnp.bfloat16)
        w2_in = w2.astype(jnp.bfloat16)
    else:
        x_in = x.astype(jnp.float32)
        w1_in = w1.astype(jnp.float32)
        w2_in = w2.astype(jnp.float32)

    B = x.shape[0]
    if B <= small_batch_max:
        return _forward_single_tile(x_in, w1_in, b1_2d, w2_in, b2_2d)

    # Big tile, but never collapse to a single grid step (v7x wants >= 2 to feed
    # both TensorCores); keep it a multiple of 8 for the (8,128) sublane rule.
    tb = min(batch_tile, _round_up(pl.cdiv(B, 2), 8))
    return _forward_batch_tiled(x_in, w1_in, b1_2d, w2_in, b2_2d, tb)


if __name__ == "__main__":
    input_size, hidden, output_size = 32, 50, 16

    key = jax.random.PRNGKey(0)
    kx, kw1, kb1, kw2, kb2, kx2 = jax.random.split(key, 6)

    # Deterministic params (mimics torch.nn.Linear uniform(-1/sqrt(fan_in), ...)).
    lim1 = 1.0 / (input_size ** 0.5)
    w1 = jax.random.uniform(kw1, (input_size, hidden), minval=-lim1, maxval=lim1,
                            dtype=jnp.float32)
    b1 = jax.random.uniform(kb1, (hidden,), minval=-lim1, maxval=lim1,
                            dtype=jnp.float32)
    lim2 = 1.0 / (hidden ** 0.5)
    w2 = jax.random.uniform(kw2, (hidden, output_size), minval=-lim2, maxval=lim2,
                            dtype=jnp.float32)
    b2 = jax.random.uniform(kb2, (output_size,), minval=-lim2, maxval=lim2,
                            dtype=jnp.float32)

    def ref_fn(xi):
        return jnp.maximum(xi @ w1 + b1, 0.0) @ w2 + b2

    # 1) Small batch -> gridless single-VMEM-tile path.
    x_small = jax.random.normal(kx, (8, input_size), dtype=jnp.float32)
    out_small = jax.block_until_ready(simple_nn_forward(x_small, w1, b1, w2, b2))
    assert out_small.shape == (8, output_size)
    assert jnp.allclose(out_small, ref_fn(x_small), atol=1e-5, rtol=1e-5)

    # 2) Larger, ragged batch (650 % tb != 0) -> batch-tiled path, no wrapper pad,
    #    boundary tile handled by Pallas masked writes.
    x_large = jax.random.normal(kx2, (650, input_size), dtype=jnp.float32)
    out_large = jax.block_until_ready(simple_nn_forward(x_large, w1, b1, w2, b2))
    assert out_large.shape == (650, output_size)
    assert jnp.allclose(out_large, ref_fn(x_large), atol=1e-4, rtol=1e-4)

    # 3) Optional bf16 activation/weight stream (looser tolerance by design).
    out_bf16 = jax.block_until_ready(
        simple_nn_forward(x_large, w1, b1, w2, b2, use_bf16=True))
    assert out_bf16.shape == (650, output_size)
    assert jnp.allclose(out_bf16, ref_fn(x_large), atol=5e-2, rtol=5e-2)

    print("KERNEL_OK")
</pallas_src>

<mosaic_0001>
module attributes {stable_mosaic.version = 11 : i64} {
  func.func @_mlp_kernel(%arg0: memref<8x32xf32, #tpu.memory_space<vmem>>, %arg1: memref<32x50xf32, #tpu.memory_space<vmem>>, %arg2: memref<1x50xf32, #tpu.memory_space<vmem>>, %arg3: memref<50x16xf32, #tpu.memory_space<vmem>>, %arg4: memref<1x16xf32, #tpu.memory_space<vmem>>, %arg5: memref<8x16xf32, #tpu.memory_space<vmem>>) attributes {dimension_semantics = [], scalar_prefetch = 0 : i64, scratch_operands = 0 : i64, tpu.core_type = #tpu.core_type<tc>} {
    %c0 = arith.constant 0 : index
    %c0_0 = arith.constant 0 : index
    %0 = vector.load %arg0[%c0, %c0_0] : memref<8x32xf32, #tpu.memory_space<vmem>>, vector<8x32xf32>
    %c0_1 = arith.constant 0 : index
    %c0_2 = arith.constant 0 : index
    %1 = vector.load %arg1[%c0_1, %c0_2] : memref<32x50xf32, #tpu.memory_space<vmem>>, vector<32x50xf32>
    %cst = arith.constant dense<0.000000e+00> : vector<8x50xf32>
    %2 = tpu.matmul %0, %1, %cst {dimension_numbers = #tpu.dot_dimension_numbers<[1], [0], [0], [1], [0, 0, 1, 1], [], []>} : vector<8x32xf32>, vector<32x50xf32>, vector<8x50xf32> -> vector<8x50xf32>
    %c0_3 = arith.constant 0 : index
    %c0_4 = arith.constant 0 : index
    %3 = vector.load %arg2[%c0_3, %c0_4] : memref<1x50xf32, #tpu.memory_space<vmem>>, vector<1x50xf32>
    %4 = vector.broadcast %3 : vector<1x50xf32> to vector<8x50xf32>
    %5 = arith.addf %2, %4 : vector<8x50xf32>
    %cst_5 = arith.constant 0.000000e+00 : f32
    %6 = vector.broadcast %cst_5 : f32 to vector<8x50xf32>
    %7 = arith.maximumf %5, %6 : vector<8x50xf32>
    %c0_6 = arith.constant 0 : index
    %c0_7 = arith.constant 0 : index
    %8 = vector.load %arg3[%c0_6, %c0_7] : memref<50x16xf32, #tpu.memory_space<vmem>>, vector<50x16xf32>
    %cst_8 = arith.constant dense<0.000000e+00> : vector<8x16xf32>
    %9 = tpu.matmul %7, %8, %cst_8 {dimension_numbers = #tpu.dot_dimension_numbers<[1], [0], [0], [1], [0, 0, 1, 1], [], []>} : vector<8x50xf32>, vector<50x16xf32>, vector<8x16xf32> -> vector<8x16xf32>
    %c0_9 = arith.constant 0 : index
    %c0_10 = arith.constant 0 : index
    %10 = vector.load %arg4[%c0_9, %c0_10] : memref<1x16xf32, #tpu.memory_space<vmem>>, vector<1x16xf32>
    %11 = vector.broadcast %10 : vector<1x16xf32> to vector<8x16xf32>
    %12 = arith.addf %9, %11 : vector<8x16xf32>
    %c0_11 = arith.constant 0 : index
    %c0_12 = arith.constant 0 : index
    %13 = vector.load %arg5[%c0_11, %c0_12] : memref<8x16xf32, #tpu.memory_space<vmem>>, vector<8x16xf32>
    tpu.vector_store %arg5[%c0_11, %c0_12], %12 {strides = array<i32>} : memref<8x16xf32, #tpu.memory_space<vmem>>, vector<8x16xf32>,
    return
  }
}

</mosaic_0001>

<llo_original>
// kernel: tpu_custom_call.1
$region0: #{tpu_custom_call.1}
  #allocation0 [shape = 'u32[]', space=smem, size = 0x4, offset = 0x4, fixed_abs, tag = 'smem constant byte address 0x4 - core index']
  #allocation1 [shape = 'u32[72,128]{1,0:T(1,128)}', space=vmem, size = 0x9000, scoped, tag = 'internal scratch']
  %s0 = inlined_call_operand.vmem [shape: f32[8,32], index: 0, kind: input, shape index: {}]
  %s1 = inlined_call_operand.vmem [shape: f32[32,50], index: 1, kind: input, shape index: {}]
  %s2 = inlined_call_operand.vmem [shape: f32[1,50], index: 2, kind: input, shape index: {}]
  %s3 = inlined_call_operand.vmem [shape: f32[50,16], index: 3, kind: input, shape index: {}]
  %s4 = inlined_call_operand.vmem [shape: f32[1,16], index: 4, kind: input, shape index: {}]
  %s5 = inlined_call_operand.hbm [shape: f32[8,16], index: 5, kind: output, shape index: {}]
  %s6 = sld [smem:[#allocation0]]
  $region30: #{tpu_custom_call.1} parent=0
    _
  %s8 = ssub.s32 1, %s6
  %s9 = scalar_select 0, %s8, %s6
  $region1: #{tpu_custom_call.1} parent=0
    #allocation2 [shape = 'u8[4096]{0}', space=vmem, size = 0x1000, scoped, tag = 'output window, operand 0, single buffered']
    #allocation3 [shape = 's32[1]{0}', space=sflag, size = 0x4, scoped, tag = 'scoped memory for tpu_custom_call.1']
    %10 = vsyncpa [#allocation3], 0
    // Predicated region
    $region2: #{tpu_custom_call.1} parent=1 // pred_check
      _
    $region3: #{tpu_custom_call.1} parent=1 // pred_check_branch
      %12 = sbr.rel (0) target = $region5
    $region4: #{tpu_custom_call.1} parent=1 // pred_region
      _
    $region5: #{tpu_custom_call.1} parent=1 // pred_fallthru
      _
    // Predicated region
    $region6: #{tpu_custom_call.1} parent=1 // pred_check
      _
    $region7: #{tpu_custom_call.1} parent=1 // pred_check_branch
      %14 = sbr.rel (0) target = $region9
    $region8: #{tpu_custom_call.1} parent=1 // pred_region
      _
    $region9: #{tpu_custom_call.1} parent=1 // pred_fallthru
      _
    // Predicated region
    $region10: #{tpu_custom_call.1} parent=1 // pred_check
      _
    $region11: #{tpu_custom_call.1} parent=1 // pred_check_branch
      %16 = sbr.rel (0) target = $region13
    $region12: #{tpu_custom_call.1} parent=1 // pred_region
      _
    $region13: #{tpu_custom_call.1} parent=1 // pred_fallthru
      _
    // Predicated region
    $region14: #{tpu_custom_call.1} parent=1 // pred_check
      _
    $region15: #{tpu_custom_call.1} parent=1 // pred_check_branch
      %18 = sbr.rel (0) target = $region17
    $region16: #{tpu_custom_call.1} parent=1 // pred_region
      _
    $region17: #{tpu_custom_call.1} parent=1 // pred_fallthru
      _
    // Predicated region
    $region18: #{tpu_custom_call.1} parent=1 // pred_check
      _
    $region19: #{tpu_custom_call.1} parent=1 // pred_check_branch
      %20 = sbr.rel (0) target = $region21
    $region20: #{tpu_custom_call.1} parent=1 // pred_region
      _
    $region21: #{tpu_custom_call.1} parent=1 // pred_fallthru
      _
    %v21 = vld [vmem:[%s0] sm:$0xff]
    %v22 = vld [vmem:[%s1] sm:$0xff]
    %v23 = vld [vmem:[%s1 + $0x8] sm:$0xff]
    %v24 = vld [vmem:[%s1 + $0x10] sm:$0xff]
    %v25 = vld [vmem:[%s1 + $0x18] sm:$0xff]
    %v26 = vld [vmem:[%s2] sm:$0x1]
    %v28 = vperm.slane %v26, 0
    %vm30 = vcmask 261120
    %v32 = vsel %vm30, %v21, 0
    %34 = vmatpush.msra.mxu0 0.0
    %35 = vmatpush.msra.mxu0 0.0
    %36 = vmatpush.msra.mxu0 0.0
    %37 = vmatpush.msra.mxu0 0.0
    %38 = vmatpush.msra.mxu0 0.0
    %39 = vmatpush.msra.mxu0 0.0
    %40 = vmatpush.msra.mxu0 0.0
    %41 = vmatpush.msra.mxu0 0.0
    %42 = vmatpush.msra.mxu0 0.0
    %43 = vmatpush.msra.mxu0 0.0
    %44 = vmatpush.msra.mxu0 0.0
    %45 = vmatpush.msra.mxu0 0.0
    %46 = vmatpush.msra.mxu0 %v25
    %47 = vmatpush.msra.mxu0 %v24
    %48 = vmatpush.msra.mxu0 %v23
    %49 = vmatpush.msra.mxu0 %v22
    %50 = vmatmul.f32.gmra.mxu0 %v32
    %v51 = vpop.f32.mrf.mxu0
    %v52 = vadd.f32 %v28, %v51
    %53 = vdwg.mxu0
    %v54 = vmax.f32 %v52, 0.0
    %v55 = vld [vmem:[%s3] sm:$0xff]
    %v56 = vld [vmem:[%s3 + $0x8] sm:$0xff]
    %v57 = vld [vmem:[%s3 + $0x10] sm:$0xff]
    %v58 = vld [vmem:[%s3 + $0x18] sm:$0xff]
    %v59 = vld [vmem:[%s3 + $0x20] sm:$0xff]
    %v60 = vld [vmem:[%s3 + $0x28] sm:$0xff]
    %v61 = vld [vmem:[%s3 + $0x30] sm:$0x3]
    %v62 = vld [vmem:[%s4] sm:$0x1]
    %v64 = vperm.slane %v62, 0
    %vm66 = vcmask 408576
    %v68 = vsel %vm66, %v54, 0
    %vm70 = vcmask 1041408
    %v72 = vsel %vm70, %v61, 0
    %74 = vmatpush.msra.mxu0 0.0
    %75 = vmatpush.msra.mxu0 0.0
    %76 = vmatpush.msra.mxu0 0.0
    %77 = vmatpush.msra.mxu0 0.0
    %78 = vmatpush.msra.mxu0 0.0
    %79 = vmatpush.msra.mxu0 0.0
    %80 = vmatpush.msra.mxu0 0.0
    %81 = vmatpush.msra.mxu0 0.0
    %82 = vmatpush.msra.mxu0 0.0
    %83 = vmatpush.msra.mxu0 %v72
    %84 = vmatpush.msra.mxu0 %v60
    %85 = vmatpush.msra.mxu0 %v59
    %86 = vmatpush.msra.mxu0 %v58
    %87 = vmatpush.msra.mxu0 %v57
    %88 = vmatpush.msra.mxu0 %v56
    %89 = vmatpush.msra.mxu0 %v55
    %90 = vmatmul.f32.gmra.mxu0 %v68
    %v91 = vpop.f32.mrf.mxu0
    %v92 = vadd.f32 %v64, %v91
    %93 = vdwg.mxu0
    %vm94 = vcmask 130048
    %95 = vst.msk [vmem:[#allocation2] sm:$0xff] %vm94, %v92
    // Predicated region
    $region22: #{tpu_custom_call.1} parent=1 // pred_check
      _
    $region23: #{tpu_custom_call.1} parent=1 // pred_check_branch
      %97 = sbr.rel (0) target = $region25
    $region24: #{tpu_custom_call.1} parent=1 // pred_region
      %99 = vsyncadd [#allocation3], 0
      %s101 = sshll.u32 [#allocation2], 4
      %s102 = int_to_ptr.vmem [resolvable:$true] %s101
      %s103 = sshll.u32 %s5, 4
      %s104 = int_to_ptr.hbm [resolvable:$true] %s103
      %106 = dma.vmem_to_hbm [thread:$0]  %s102, 128, %s104, [#allocation3]
    $region25: #{tpu_custom_call.1} parent=1 // pred_fallthru
      _
    // Predicated region
    $region26: #{tpu_custom_call.1} parent=1 // pred_check
      _
    $region27: #{tpu_custom_call.1} parent=1 // pred_check_branch
      %108 = sbr.rel (0) target = $region29
    $region28: #{tpu_custom_call.1} parent=1 // pred_region
      %110 = dma.done [#allocation3], 128
    $region29: #{tpu_custom_call.1} parent=1 // pred_fallthru
      _
    %111 = vsyncpa [#allocation3], 1

</llo_original>
